<compile_context>
chip_gen: v7x
topology: tpu7x:2x2x1
jax: 0.10.0
libtpu: 0.0.40
codegen_flags: <defaults>
</compile_context>

<pallas_src>
import jax
import jax.numpy as jnp
from jax.experimental import pallas as pl
from jax.experimental.pallas import tpu as pltpu


def _h_swish_kernel(x_ref, o_ref):
    x = x_ref[...].astype(jnp.float32)
    # h_sigmoid(x) = relu6(x + 3) / 6 ; h_swish(x) = x * h_sigmoid(x)
    o_ref[...] = (x * (jnp.clip(x + 3.0, 0.0, 6.0) * (1.0 / 6.0))).astype(o_ref.dtype)


def _round_up(a, b):
    return ((a + b - 1) // b) * b


def _sublane_multiple(dtype):
    # Native (sublane, 128) tiling minimum per dtype width.
    return {4: 8, 2: 16, 1: 32}.get(jnp.dtype(dtype).itemsize, 8)


def h_swish_pallas(x, *, rows_per_tile=1024):
    """Elementwise h_swish over a tensor of any shape (dtype preserved)."""
    orig_shape, dtype = x.shape, x.dtype
    p = int(x.size)
    if p == 0:
        return x

    sub = _sublane_multiple(dtype)

    # Pick the largest lane width (multiple of 128) that divides p so the
    # reshape into a lane-dense (rows, lane) slab is free (no pad, no slice).
    lane = None
    for cand in (1024, 512, 256, 128):
        if p % cand == 0:
            lane = cand
            break

    padded = lane is None
    if padded:
        # Ragged size: pad the flat view up to a whole number of lanes.
        lane = 1024 if p >= 1024 else 128
        nrows = pl.cdiv(p, lane)
        xf = jnp.pad(jnp.ravel(x), (0, nrows * lane - p))
        x2 = xf.reshape(nrows, lane)
    else:
        nrows = p // lane
        x2 = x.reshape(nrows, lane)  # free, row-major

    # Row tile: as large as possible up to rows_per_tile, sublane-aligned.
    tr = min(rows_per_tile, _round_up(nrows, sub))
    # Ensure >=2 grid steps whenever the rows can be split on sublane
    # boundaries, so both v7x TensorCores get work (no effect on v5e/v6e).
    if nrows <= tr and nrows >= 2 * sub:
        tr = _round_up(pl.cdiv(nrows, 2), sub)
    grid = pl.cdiv(nrows, tr)  # ragged final block is masked by Pallas

    itemsize = jnp.dtype(dtype).itemsize
    cost = pl.CostEstimate(flops=5 * p, transcendentals=0,
                           bytes_accessed=2 * p * itemsize)

    extra = {}
    if padded:
        # Padded buffer is fresh -> donate it as the output (halves peak HBM
        # footprint on the fallback path; no-op for DMA traffic).
        extra["input_output_aliases"] = {0: 0}

    out2 = pl.pallas_call(
        _h_swish_kernel,
        out_shape=jax.ShapeDtypeStruct((nrows, lane), dtype),
        grid=(grid,),
        in_specs=[pl.BlockSpec((tr, lane), lambda i: (i, 0))],
        out_specs=pl.BlockSpec((tr, lane), lambda i: (i, 0)),
        compiler_params=pltpu.CompilerParams(
            dimension_semantics=("parallel",),
            vmem_limit_bytes=32 * 1024 * 1024),
        cost_estimate=cost,
        **extra,
    )(x2)

    if padded:
        return out2.reshape(-1)[:p].reshape(orig_shape)
    return out2.reshape(orig_shape)


# ------------------------------ pure-JAX reference -------------------------- #

def h_swish_reference(x):
    xf = x.astype(jnp.float32)
    return (xf * jnp.clip(xf + 3.0, 0.0, 6.0) / 6.0).astype(x.dtype)


# ------------------------------------ main ---------------------------------- #

if __name__ == "__main__":
    key = jax.random.PRNGKey(0)

    # 1) NCHW activation per the module spec; size is 128-aligned -> copy-free path.
    x = 4.0 * jax.random.normal(key, (2, 4, 16, 16), jnp.float32)
    out = jax.block_until_ready(h_swish_pallas(x))
    ref = jax.block_until_ready(h_swish_reference(x))
    assert out.shape == x.shape and out.dtype == x.dtype, (out.shape, out.dtype)
    assert jnp.allclose(out, ref, rtol=1e-6, atol=1e-6), \
        f"max abs err = {float(jnp.max(jnp.abs(out - ref)))}"

    # 2) Ragged size (210 elements, not a multiple of 128) -> padded fallback path.
    k2 = jax.random.PRNGKey(1)
    xr = 4.0 * jax.random.normal(k2, (2, 3, 7, 5), jnp.float32)
    outr = jax.block_until_ready(h_swish_pallas(xr))
    refr = jax.block_until_ready(h_swish_reference(xr))
    assert outr.shape == xr.shape and outr.dtype == xr.dtype
    assert jnp.allclose(outr, refr, rtol=1e-6, atol=1e-6), \
        f"max abs err = {float(jnp.max(jnp.abs(outr - refr)))}"

    # 3) bf16 input -> 16-sublane tiling path; f32 intermediate matches reference.
    xb = (4.0 * jax.random.normal(jax.random.PRNGKey(2), (2, 4, 16, 16),
                                  jnp.float32)).astype(jnp.bfloat16)
    outb = jax.block_until_ready(h_swish_pallas(xb))
    refb = jax.block_until_ready(h_swish_reference(xb))
    assert outb.shape == xb.shape and outb.dtype == xb.dtype
    assert jnp.all(outb == refb), "bf16 mismatch"

    print("KERNEL_OK")
</pallas_src>

<mosaic_0001>
module attributes {stable_mosaic.version = 11 : i64} {
  func.func @_h_swish_kernel(%arg0: i32, %arg1: memref<8x1024xf32, #tpu.memory_space<vmem>>, %arg2: memref<8x1024xf32, #tpu.memory_space<vmem>>) attributes {dimension_semantics = [#tpu.dimension_semantics<parallel>], iteration_bounds = array<i64: 1>, scalar_prefetch = 0 : i64, scratch_operands = 0 : i64, tpu.core_type = #tpu.core_type<tc>, window_params = [{transform_indices = @transform_0, window_bounds = array<i64: 8, 1024>}, {transform_indices = @transform_1, window_bounds = array<i64: 8, 1024>}]} {
    %c0 = arith.constant 0 : index
    %c0_0 = arith.constant 0 : index
    %0 = vector.load %arg1[%c0, %c0_0] : memref<8x1024xf32, #tpu.memory_space<vmem>>, vector<8x1024xf32>
    %cst = arith.constant 3.000000e+00 : f32
    %1 = vector.broadcast %cst : f32 to vector<8x1024xf32>
    %2 = arith.addf %0, %1 : vector<8x1024xf32>
    %cst_1 = arith.constant 0.000000e+00 : f32
    %cst_2 = arith.constant 6.000000e+00 : f32
    %3 = vector.broadcast %cst_1 : f32 to vector<8x1024xf32>
    %4 = arith.maximumf %3, %2 : vector<8x1024xf32>
    %5 = vector.broadcast %cst_2 : f32 to vector<8x1024xf32>
    %6 = arith.minimumf %5, %4 : vector<8x1024xf32>
    %cst_3 = arith.constant 0.166666672 : f32
    %7 = vector.broadcast %cst_3 : f32 to vector<8x1024xf32>
    %8 = arith.mulf %6, %7 : vector<8x1024xf32>
    %9 = arith.mulf %0, %8 : vector<8x1024xf32>
    %c0_4 = arith.constant 0 : index
    %c0_5 = arith.constant 0 : index
    %10 = vector.load %arg2[%c0_4, %c0_5] : memref<8x1024xf32, #tpu.memory_space<vmem>>, vector<8x1024xf32>
    tpu.vector_store %arg2[%c0_4, %c0_5], %9 {strides = array<i32>} : memref<8x1024xf32, #tpu.memory_space<vmem>>, vector<8x1024xf32>,
    return
  }
  func.func @transform_0(%arg0: i32) -> (i32, i32) {
    %c0_i32 = arith.constant 0 : i32
    %c0_i32_0 = arith.constant 0 : i32
    return %arg0, %c0_i32 : i32, i32
  }
  func.func @transform_1(%arg0: i32) -> (i32, i32) {
    %c0_i32 = arith.constant 0 : i32
    %c0_i32_0 = arith.constant 0 : i32
    return %arg0, %c0_i32 : i32, i32
  }
}

</mosaic_0001>

<llo_original>
// kernel: tpu_custom_call.1
$region0: #{tpu_custom_call.1}
  #allocation0 [shape = 'u32[]', space=smem, size = 0x4, offset = 0x4, fixed_abs, tag = 'smem constant byte address 0x4 - core index']
  #allocation1 [shape = 'u32[144,128]{1,0:T(1,128)}', space=vmem, size = 0x12000, scoped, tag = 'internal scratch']
  %s0 = inlined_call_operand.hbm [shape: f32[2,1024], index: 0, kind: input, shape index: {}]
  %s1 = inlined_call_operand.hbm [shape: f32[2,1024], index: 1, kind: output, shape index: {}]
  %s2 = sld [smem:[#allocation0]]
  $region18: #{tpu_custom_call.1} parent=0
    _
  %s4 = ssub.s32 1, %s2
  %s5 = scalar_select 0, %s4, %s2
  $region1: #{tpu_custom_call.1} parent=0
    #allocation2 [shape = 'u8[32768]{0}', space=vmem, size = 0x8000, scoped, tag = 'input window, operand 0, single buffered']
    #allocation3 [shape = 's32[1]{0}', space=sflag, size = 0x4, scoped, tag = 'scoped memory for tpu_custom_call.1']
    #allocation4 [shape = 's32[1]{0}', space=sflag, size = 0x4, scoped, tag = 'scoped memory for tpu_custom_call.1']
    #allocation5 [shape = 'u8[32768]{0}', space=vmem, size = 0x8000, scoped, tag = 'output window, operand 0, single buffered']
    %6 = vsyncpa [#allocation3], 0
    %7 = vsyncpa [#allocation4], 0
    // Predicated region
    $region2: #{tpu_custom_call.1} parent=1 // pred_check
      _
    $region3: #{tpu_custom_call.1} parent=1 // pred_check_branch
      %9 = sbr.rel (0) target = $region5
    $region4: #{tpu_custom_call.1} parent=1 // pred_region
      %s11 = ssub.s32 1024, 256
      %12 = vsyncadd [#allocation3], %s11
      %s13 = sshll.u32 [#allocation2], 4
      %s14 = int_to_ptr.vmem [resolvable:$true] %s13
      %19 = dma.hbm_to_vmem [thread:$0]  %s0, 256, %s14, [#allocation3], 256, 256, 16
    $region5: #{tpu_custom_call.1} parent=1 // pred_fallthru
      _
    // Predicated region
    $region6: #{tpu_custom_call.1} parent=1 // pred_check
      _
    $region7: #{tpu_custom_call.1} parent=1 // pred_check_branch
      %21 = sbr.rel (0) target = $region9
    $region8: #{tpu_custom_call.1} parent=1 // pred_region
      %22 = dma.done [#allocation3], 1024
    $region9: #{tpu_custom_call.1} parent=1 // pred_fallthru
      _
    %v23 = vld [vmem:[#allocation2] sm:$0xff]
    %v24 = vld [vmem:[#allocation2 + $0x8] sm:$0xff]
    %v25 = vld [vmem:[#allocation2 + $0x10] sm:$0xff]
    %v26 = vld [vmem:[#allocation2 + $0x18] sm:$0xff]
    %v27 = vld [vmem:[#allocation2 + $0x20] sm:$0xff]
    %v28 = vld [vmem:[#allocation2 + $0x28] sm:$0xff]
    %v29 = vld [vmem:[#allocation2 + $0x30] sm:$0xff]
    %v30 = vld [vmem:[#allocation2 + $0x38] sm:$0xff]
    %v31 = vadd.f32 %v23, 3.0
    %v32 = vadd.f32 %v24, 3.0
    %v33 = vadd.f32 %v25, 3.0
    %v34 = vadd.f32 %v26, 3.0
    %v35 = vadd.f32 %v27, 3.0
    %v36 = vadd.f32 %v28, 3.0
    %v37 = vadd.f32 %v29, 3.0
    %v38 = vadd.f32 %v30, 3.0
    %v39 = vmax.f32 %v31, 0.0
    %v40 = vmax.f32 %v32, 0.0
    %v41 = vmax.f32 %v33, 0.0
    %v42 = vmax.f32 %v34, 0.0
    %v43 = vmax.f32 %v35, 0.0
    %v44 = vmax.f32 %v36, 0.0
    %v45 = vmax.f32 %v37, 0.0
    %v46 = vmax.f32 %v38, 0.0
    %v47 = vmin.f32 %v39, 6.0
    %v48 = vmin.f32 %v40, 6.0
    %v49 = vmin.f32 %v41, 6.0
    %v50 = vmin.f32 %v42, 6.0
    %v51 = vmin.f32 %v43, 6.0
    %v52 = vmin.f32 %v44, 6.0
    %v53 = vmin.f32 %v45, 6.0
    %v54 = vmin.f32 %v46, 6.0
    %v55 = vmul.f32 %v47, 0.16666667
    %v56 = vmul.f32 %v48, 0.16666667
    %v57 = vmul.f32 %v49, 0.16666667
    %v58 = vmul.f32 %v50, 0.16666667
    %v59 = vmul.f32 %v51, 0.16666667
    %v60 = vmul.f32 %v52, 0.16666667
    %v61 = vmul.f32 %v53, 0.16666667
    %v62 = vmul.f32 %v54, 0.16666667
    %v63 = vmul.f32 %v23, %v55
    %v64 = vmul.f32 %v24, %v56
    %v65 = vmul.f32 %v25, %v57
    %v66 = vmul.f32 %v26, %v58
    %v67 = vmul.f32 %v27, %v59
    %v68 = vmul.f32 %v28, %v60
    %v69 = vmul.f32 %v29, %v61
    %v70 = vmul.f32 %v30, %v62
    %71 = vst [vmem:[#allocation5] sm:$0xff] %v63
    %72 = vst [vmem:[#allocation5 + $0x8] sm:$0xff] %v64
    %73 = vst [vmem:[#allocation5 + $0x10] sm:$0xff] %v65
    %74 = vst [vmem:[#allocation5 + $0x18] sm:$0xff] %v66
    %75 = vst [vmem:[#allocation5 + $0x20] sm:$0xff] %v67
    %76 = vst [vmem:[#allocation5 + $0x28] sm:$0xff] %v68
    %77 = vst [vmem:[#allocation5 + $0x30] sm:$0xff] %v69
    %78 = vst [vmem:[#allocation5 + $0x38] sm:$0xff] %v70
    // Predicated region
    $region10: #{tpu_custom_call.1} parent=1 // pred_check
      _
    $region11: #{tpu_custom_call.1} parent=1 // pred_check_branch
      %80 = sbr.rel (0) target = $region13
    $region12: #{tpu_custom_call.1} parent=1 // pred_region
      %s82 = ssub.s32 1024, 256
      %83 = vsyncadd [#allocation4], %s82
      %s84 = sshll.u32 [#allocation5], 4
      %s85 = int_to_ptr.vmem [resolvable:$true] %s84
      %90 = dma.vmem_to_hbm [thread:$0]  %s85, 256, %s1, [#allocation4], 256, 256, 16
    $region13: #{tpu_custom_call.1} parent=1 // pred_fallthru
      _
    // Predicated region
    $region14: #{tpu_custom_call.1} parent=1 // pred_check
      _
    $region15: #{tpu_custom_call.1} parent=1 // pred_check_branch
      %92 = sbr.rel (0) target = $region17
    $region16: #{tpu_custom_call.1} parent=1 // pred_region
      %93 = dma.done [#allocation4], 1024
    $region17: #{tpu_custom_call.1} parent=1 // pred_fallthru
      _
    %94 = vsyncpa [#allocation3], 1
    %95 = vsyncpa [#allocation4], 1

</llo_original>
